<compile_context>
chip_gen: v7x
topology: tpu7x:2x2x1
jax: 0.10.0
libtpu: 0.0.40
codegen_flags: <defaults>
</compile_context>

<pallas_src>
import jax
import jax.numpy as jnp
from jax.experimental import pallas as pl
from jax.experimental.pallas import tpu as pltpu

_LANE = 128
_VMEM_LIMIT_BYTES = 32 * 1024 * 1024   # explicit scoped VMEM budget (v7x-safe)
_DEFAULT_TM = 256                      # production row-tile size


def _round_up(v, m):
    return (v + m - 1) // m * m


def _compiler_params():
    return pltpu.CompilerParams(dimension_semantics=("parallel",),
                                vmem_limit_bytes=_VMEM_LIMIT_BYTES)


def _row_tiles(m, tm_max):
    tm = min(_round_up(tm_max, 8), _round_up(m, 8))
    mp = _round_up(m, tm)
    return tm, mp


def _pad_rows(a, mp):
    m = a.shape[0]
    return a if m == mp else jnp.pad(a, ((0, mp - m), (0, 0)))


# ----------------------------- in-kernel helpers -----------------------------

def _layer_norm(x_f32, g_ref, beta_ref, inv_c, eps):
    """LayerNorm over the first c_true columns; remaining columns are zero
    lane-padding, so sums divided by the true channel count give exact stats."""
    mu = jnp.sum(x_f32, axis=-1, keepdims=True) * inv_c
    msq = jnp.sum(x_f32 * x_f32, axis=-1, keepdims=True) * inv_c
    var = msq - mu * mu                                       # biased, like torch LN
    xn = (x_f32 - mu) * jax.lax.rsqrt(var + eps)
    return xn * g_ref[...].astype(jnp.float32) + beta_ref[...].astype(jnp.float32)


def _gelu_tanh(x):
    # TODO(synk): nn.GELU is erf-exact; tanh approximation used in-kernel for
    # robust Mosaic lowering (max abs deviation ~3e-3).
    u = 0.7978845608028654 * (x + 0.044715 * x * x * x)
    return 0.5 * x * (1.0 + jnp.tanh(u))


# ----------------------------- kernels ---------------------------------------

def _make_ln_qkv_kernel(c_true, eps):
    """norm1 fused into the qkv projection: o = LN(x) @ Wqkv + bqkv."""
    inv_c = 1.0 / float(c_true)

    def kernel(x_ref, g_ref, beta_ref, w_ref, b_ref, o_ref):
        x = x_ref[...].astype(jnp.float32)                    # (TM, Cp)
        xn = _layer_norm(x, g_ref, beta_ref, inv_c, eps)
        acc = jax.lax.dot_general(                            # MXU bf16 in / f32 acc
            xn.astype(w_ref.dtype), w_ref[...],
            (((1,), (0,)), ((), ())), preferred_element_type=jnp.float32)
        acc = acc + b_ref[...].astype(jnp.float32)
        o_ref[...] = acc.astype(o_ref.dtype)

    return kernel


def _make_attn_proj_kernel(num_heads, dim, head_dim, scale, out_width,
                           compute_dtype):
    """Per-batch multi-head softmax attention, fused with the attention output
    projection and the first residual add: o = x + proj(attn(qkv))."""

    def kernel(qkv_ref, res_ref, w_ref, b_ref, o_ref):
        z = qkv_ref[...].astype(jnp.float32)                  # (N, padded 3*dim)
        n = z.shape[0]
        outs = []
        for h in range(num_heads):
            lo = h * head_dim
            hi = lo + head_dim
            qh = z[:, lo:hi]
            kh = z[:, dim + lo:dim + hi]
            vh = z[:, 2 * dim + lo:2 * dim + hi]
            s = jax.lax.dot_general(                          # q @ k^T
                qh.astype(compute_dtype), kh.astype(compute_dtype),
                (((1,), (1,)), ((), ())), preferred_element_type=jnp.float32)
            s = s * scale
            s = s - jnp.max(s, axis=-1, keepdims=True)
            p = jnp.exp(s)
            p = p * pl.reciprocal(jnp.sum(p, axis=-1, keepdims=True), approx=True)
            outs.append(jax.lax.dot_general(                  # attn @ v
                p.astype(compute_dtype), vh.astype(compute_dtype),
                (((1,), (0,)), ((), ())), preferred_element_type=jnp.float32))
        if out_width > dim:
            outs.append(jnp.zeros((n, out_width - dim), jnp.float32))
        y = jnp.concatenate(outs, axis=-1)                    # (N, Cp)
        acc = jax.lax.dot_general(                            # output projection
            y.astype(w_ref.dtype), w_ref[...],
            (((1,), (0,)), ((), ())), preferred_element_type=jnp.float32)
        o_ref[...] = (acc + b_ref[...].astype(jnp.float32)
                      + res_ref[...].astype(jnp.float32)).astype(o_ref.dtype)

    return kernel


def _make_ln_mlp_kernel(c_true, eps):
    """norm2 + fc1 + GELU + fc2 + residual, fully fused (hidden never leaves
    VMEM): o = x + fc2(GELU(fc1(LN(x))))."""
    inv_c = 1.0 / float(c_true)

    def kernel(x_ref, g_ref, beta_ref, w1_ref, b1_ref, w2_ref, b2_ref, o_ref):
        x = x_ref[...].astype(jnp.float32)                    # (TM, Cp)
        xn = _layer_norm(x, g_ref, beta_ref, inv_c, eps)
        h = jax.lax.dot_general(                              # fc1
            xn.astype(w1_ref.dtype), w1_ref[...],
            (((1,), (0,)), ((), ())), preferred_element_type=jnp.float32)
        h = _gelu_tanh(h + b1_ref[...].astype(jnp.float32))
        acc = jax.lax.dot_general(                            # fc2
            h.astype(w2_ref.dtype), w2_ref[...],
            (((1,), (0,)), ((), ())), preferred_element_type=jnp.float32)
        o_ref[...] = (acc + b2_ref[...].astype(jnp.float32) + x).astype(o_ref.dtype)

    return kernel


# ----------------------------- wrappers --------------------------------------

def _ln_qkv(x, gamma, beta, w, bias, *, c_true, eps, out_dtype, tm_max):
    m, k = x.shape
    f = w.shape[1]
    tm, mp = _row_tiles(m, tm_max)
    x_in = _pad_rows(x, mp)
    out = pl.pallas_call(
        _make_ln_qkv_kernel(c_true, eps),
        out_shape=jax.ShapeDtypeStruct((mp, f), out_dtype),
        grid_spec=pltpu.PrefetchScalarGridSpec(
            num_scalar_prefetch=0,
            grid=(mp // tm,),
            in_specs=[
                pl.BlockSpec((tm, k), lambda i: (i, 0)),
                pl.BlockSpec((1, k), lambda i: (0, 0)),
                pl.BlockSpec((1, k), lambda i: (0, 0)),
                pl.BlockSpec((k, f), lambda i: (0, 0)),
                pl.BlockSpec((1, f), lambda i: (0, 0)),
            ],
            out_specs=pl.BlockSpec((tm, f), lambda i: (i, 0))),
        compiler_params=_compiler_params(),
    )(x_in, gamma, beta, w, bias)
    return out if mp == m else out[:m]


def _attention_proj(qkv, x_res, w_proj, b_proj, *, num_heads, dim, out_width,
                    compute_dtype):
    b, n, c3p = qkv.shape
    head_dim = dim // num_heads
    scale = float(head_dim) ** -0.5
    return pl.pallas_call(
        _make_attn_proj_kernel(num_heads, dim, head_dim, scale, out_width,
                               compute_dtype),
        out_shape=jax.ShapeDtypeStruct((b, n, out_width), jnp.float32),
        grid_spec=pltpu.PrefetchScalarGridSpec(
            num_scalar_prefetch=0,
            grid=(b,),
            in_specs=[
                pl.BlockSpec((None, n, c3p), lambda i: (i, 0, 0)),
                pl.BlockSpec((None, n, out_width), lambda i: (i, 0, 0)),
                pl.BlockSpec((out_width, out_width), lambda i: (0, 0)),
                pl.BlockSpec((1, out_width), lambda i: (0, 0)),
            ],
            out_specs=pl.BlockSpec((None, n, out_width), lambda i: (i, 0, 0))),
        compiler_params=_compiler_params(),
    )(qkv, x_res, w_proj, b_proj)


def _ln_mlp(x, gamma, beta, w1, b1, w2, b2, *, c_true, eps, tm_max):
    m, k = x.shape
    hp = w1.shape[1]
    fout = w2.shape[1]
    tm, mp = _row_tiles(m, tm_max)
    x_in = _pad_rows(x, mp)
    out = pl.pallas_call(
        _make_ln_mlp_kernel(c_true, eps),
        out_shape=jax.ShapeDtypeStruct((mp, fout), jnp.float32),
        grid_spec=pltpu.PrefetchScalarGridSpec(
            num_scalar_prefetch=0,
            grid=(mp // tm,),
            in_specs=[
                pl.BlockSpec((tm, k), lambda i: (i, 0)),
                pl.BlockSpec((1, k), lambda i: (0, 0)),
                pl.BlockSpec((1, k), lambda i: (0, 0)),
                pl.BlockSpec((k, hp), lambda i: (0, 0)),
                pl.BlockSpec((1, hp), lambda i: (0, 0)),
                pl.BlockSpec((hp, fout), lambda i: (0, 0)),
                pl.BlockSpec((1, fout), lambda i: (0, 0)),
            ],
            out_specs=pl.BlockSpec((tm, fout), lambda i: (i, 0))),
        compiler_params=_compiler_params(),
    )(x_in, gamma, beta, w1, b1, w2, b2)
    return out if mp == m else out[:m]


def prepare_block_params(raw, compute_dtype=jnp.bfloat16):
    """One-time parameter prep (outside the forward path): zero-pad every
    feature dim to a multiple of 128 lanes and cast matmul weights to the MXU
    compute dtype.  Linear weights are expected in (in_features, out_features)
    layout (i.e. torch `linear.weight.T`, transposed once here, not per call)."""
    c = raw["w_proj"].shape[0]
    c3 = raw["w_qkv"].shape[1]
    hidden = raw["w_fc1"].shape[1]
    cp = _round_up(c, _LANE)
    c3p = _round_up(c3, _LANE)
    hp = _round_up(hidden, _LANE)

    def mat(w, rows, cols):
        w = jnp.asarray(w, jnp.float32)
        w = jnp.pad(w, ((0, rows - w.shape[0]), (0, cols - w.shape[1])))
        return w.astype(compute_dtype)

    def vec(v, n):
        v = jnp.asarray(v, jnp.float32)
        return jnp.pad(v, (0, n - v.shape[0])).reshape(1, n)

    return {
        "g1": vec(raw["g1"], cp), "b1": vec(raw["b1"], cp),
        "w_qkv": mat(raw["w_qkv"], cp, c3p), "b_qkv": vec(raw["b_qkv"], c3p),
        "w_proj": mat(raw["w_proj"], cp, cp), "b_proj": vec(raw["b_proj"], cp),
        "g2": vec(raw["g2"], cp), "b2": vec(raw["b2"], cp),
        "w_fc1": mat(raw["w_fc1"], cp, hp), "b_fc1": vec(raw["b_fc1"], hp),
        "w_fc2": mat(raw["w_fc2"], hp, cp), "b_fc2": vec(raw["b_fc2"], cp),
    }


def block_forward(x, params, num_heads, *, eps=1e-5, tm_max=_DEFAULT_TM):
    """Forward pass of Block (eval mode: dropout / drop_path are identity)."""
    b, n, c = x.shape
    assert c % num_heads == 0
    cp = params["w_proj"].shape[1]
    c3p = params["w_qkv"].shape[1]
    m = b * n
    compute_dtype = params["w_qkv"].dtype

    x_p = x.reshape(m, c).astype(jnp.float32)
    if cp != c:                                   # lane-dense working width
        x_p = jnp.pad(x_p, ((0, 0), (0, cp - c)))

    # 1) norm1 -> fused qkv projection (bf16 output: only feeds MXU matmuls)
    qkv = _ln_qkv(x_p, params["g1"], params["b1"], params["w_qkv"],
                  params["b_qkv"], c_true=c, eps=eps,
                  out_dtype=compute_dtype, tm_max=tm_max)

    # 2) attention + output projection + residual (one parallel step per batch)
    x1 = _attention_proj(qkv.reshape(b, n, c3p), x_p.reshape(b, n, cp),
                         params["w_proj"], params["b_proj"],
                         num_heads=num_heads, dim=c, out_width=cp,
                         compute_dtype=compute_dtype)
    x1 = x1.reshape(m, cp)

    # 3) norm2 -> fc1 -> GELU -> fc2 -> + residual (hidden never leaves VMEM)
    x2 = _ln_mlp(x1, params["g2"], params["b2"], params["w_fc1"],
                 params["b_fc1"], params["w_fc2"], params["b_fc2"],
                 c_true=c, eps=eps, tm_max=tm_max)

    return x2[:, :c].reshape(b, n, c).astype(x.dtype)


# ----------------------------- reference -------------------------------------

def block_reference(x, raw, num_heads, eps=1e-5):
    def ln(v, g, bta):
        mu = v.mean(-1, keepdims=True)
        var = ((v - mu) ** 2).mean(-1, keepdims=True)
        return (v - mu) / jnp.sqrt(var + eps) * g + bta

    b, n, c = x.shape
    hd = c // num_heads
    h = ln(x, raw["g1"], raw["b1"])
    qkv = h @ raw["w_qkv"] + raw["b_qkv"]
    qkv = qkv.reshape(b, n, 3, num_heads, hd).transpose(2, 0, 3, 1, 4)
    q, k, v = qkv[0], qkv[1], qkv[2]
    attn = jax.nn.softmax(jnp.einsum("bhnd,bhmd->bhnm", q, k) * hd ** -0.5, axis=-1)
    y = jnp.einsum("bhnm,bhmd->bhnd", attn, v).transpose(0, 2, 1, 3).reshape(b, n, c)
    x1 = x + (y @ raw["w_proj"] + raw["b_proj"])
    h2 = ln(x1, raw["g2"], raw["b2"])
    mlp = jax.nn.gelu(h2 @ raw["w_fc1"] + raw["b_fc1"], approximate=False)
    mlp = mlp @ raw["w_fc2"] + raw["b_fc2"]
    return x1 + mlp


if __name__ == "__main__":
    B, N, C = 2, 8, 32          # batch=2, seq=8, dim=32
    NUM_HEADS = 4
    HIDDEN = int(C * 4.0)

    key = jax.random.PRNGKey(0)
    ks = jax.random.split(key, 10)

    def rnd(k, shape, s):
        return jax.random.normal(k, shape, dtype=jnp.float32) * s

    raw = {
        "g1": jnp.ones((C,), jnp.float32), "b1": jnp.zeros((C,), jnp.float32),
        # qkv_bias=False is the Block default -> zero qkv bias
        "w_qkv": rnd(ks[0], (C, 3 * C), 0.1), "b_qkv": jnp.zeros((3 * C,), jnp.float32),
        "w_proj": rnd(ks[1], (C, C), 0.1), "b_proj": rnd(ks[2], (C,), 0.05),
        "g2": 1.0 + rnd(ks[3], (C,), 0.05), "b2": rnd(ks[4], (C,), 0.05),
        "w_fc1": rnd(ks[5], (C, HIDDEN), 0.1), "b_fc1": rnd(ks[6], (HIDDEN,), 0.05),
        "w_fc2": rnd(ks[7], (HIDDEN, C), 0.1), "b_fc2": rnd(ks[8], (C,), 0.05),
    }
    x = jax.random.normal(ks[9], (B, N, C), dtype=jnp.float32)

    params = prepare_block_params(raw, compute_dtype=jnp.bfloat16)
    # tm_max=8 makes the tiny demo exercise a multi-step parallel row grid;
    # the default (256) is the intended production tile size.
    out = jax.block_until_ready(block_forward(x, params, NUM_HEADS, tm_max=8))

    ref = block_reference(x, raw, NUM_HEADS)
    assert out.shape == (B, N, C)
    max_err = float(jnp.max(jnp.abs(out - ref)))
    assert jnp.allclose(out, ref, atol=3e-2, rtol=3e-2), f"max abs err {max_err}"
    print("KERNEL_OK")
</pallas_src>

<mosaic_0001>
module attributes {stable_mosaic.version = 11 : i64} {
  func.func @kernel(%arg0: i32, %arg1: memref<8x128xf32, #tpu.memory_space<vmem>>, %arg2: memref<1x128xf32, #tpu.memory_space<vmem>>, %arg3: memref<1x128xf32, #tpu.memory_space<vmem>>, %arg4: memref<128x128xbf16, #tpu.memory_space<vmem>>, %arg5: memref<1x128xf32, #tpu.memory_space<vmem>>, %arg6: memref<8x128xbf16, #tpu.memory_space<vmem>>) attributes {dimension_semantics = [#tpu.dimension_semantics<parallel>], iteration_bounds = array<i64: 2>, scalar_prefetch = 0 : i64, scratch_operands = 0 : i64, tpu.core_type = #tpu.core_type<tc>, window_params = [{transform_indices = @transform_0, window_bounds = array<i64: 8, 128>}, {pipeline_mode = #tpu.pipeline_mode<synchronous>, transform_indices = @transform_1, window_bounds = array<i64: 1, 128>}, {pipeline_mode = #tpu.pipeline_mode<synchronous>, transform_indices = @transform_2, window_bounds = array<i64: 1, 128>}, {pipeline_mode = #tpu.pipeline_mode<synchronous>, transform_indices = @transform_3, window_bounds = array<i64: 128, 128>}, {pipeline_mode = #tpu.pipeline_mode<synchronous>, transform_indices = @transform_4, window_bounds = array<i64: 1, 128>}, {transform_indices = @transform_5, window_bounds = array<i64: 8, 128>}]} {
    %c0 = arith.constant 0 : index
    %c0_0 = arith.constant 0 : index
    %0 = vector.load %arg1[%c0, %c0_0] : memref<8x128xf32, #tpu.memory_space<vmem>>, vector<8x128xf32>
    %cst = arith.constant dense<0.000000e+00> : vector<8xf32>
    %1 = vector.multi_reduction <add>, %0, %cst [1] : vector<8x128xf32> to vector<8xf32>
    %2 = vector.shape_cast %1 : vector<8xf32> to vector<8x1xf32>
    %cst_1 = arith.constant 3.125000e-02 : f32
    %3 = vector.broadcast %cst_1 : f32 to vector<8x1xf32>
    %4 = arith.mulf %2, %3 : vector<8x1xf32>
    %5 = arith.mulf %0, %0 : vector<8x128xf32>
    %cst_2 = arith.constant dense<0.000000e+00> : vector<8xf32>
    %6 = vector.multi_reduction <add>, %5, %cst_2 [1] : vector<8x128xf32> to vector<8xf32>
    %7 = vector.shape_cast %6 : vector<8xf32> to vector<8x1xf32>
    %cst_3 = arith.constant 3.125000e-02 : f32
    %8 = vector.broadcast %cst_3 : f32 to vector<8x1xf32>
    %9 = arith.mulf %7, %8 : vector<8x1xf32>
    %10 = arith.mulf %4, %4 : vector<8x1xf32>
    %11 = arith.subf %9, %10 : vector<8x1xf32>
    %12 = vector.broadcast %4 : vector<8x1xf32> to vector<8x128xf32>
    %13 = arith.subf %0, %12 : vector<8x128xf32>
    %cst_4 = arith.constant 9.99999974E-6 : f32
    %14 = vector.broadcast %cst_4 : f32 to vector<8x1xf32>
    %15 = arith.addf %11, %14 : vector<8x1xf32>
    %16 = math.rsqrt %15 : vector<8x1xf32>
    %17 = vector.broadcast %16 : vector<8x1xf32> to vector<8x128xf32>
    %18 = arith.mulf %13, %17 : vector<8x128xf32>
    %c0_5 = arith.constant 0 : index
    %c0_6 = arith.constant 0 : index
    %19 = vector.load %arg2[%c0_5, %c0_6] : memref<1x128xf32, #tpu.memory_space<vmem>>, vector<1x128xf32>
    %20 = vector.broadcast %19 : vector<1x128xf32> to vector<8x128xf32>
    %21 = arith.mulf %18, %20 : vector<8x128xf32>
    %c0_7 = arith.constant 0 : index
    %c0_8 = arith.constant 0 : index
    %22 = vector.load %arg3[%c0_7, %c0_8] : memref<1x128xf32, #tpu.memory_space<vmem>>, vector<1x128xf32>
    %23 = vector.broadcast %22 : vector<1x128xf32> to vector<8x128xf32>
    %24 = arith.addf %21, %23 : vector<8x128xf32>
    %25 = arith.truncf %24 : vector<8x128xf32> to vector<8x128xbf16>
    %c0_9 = arith.constant 0 : index
    %c0_10 = arith.constant 0 : index
    %26 = vector.load %arg4[%c0_9, %c0_10] : memref<128x128xbf16, #tpu.memory_space<vmem>>, vector<128x128xbf16>
    %cst_11 = arith.constant dense<0.000000e+00> : vector<8x128xf32>
    %27 = tpu.matmul %25, %26, %cst_11 {dimension_numbers = #tpu.dot_dimension_numbers<[1], [0], [0], [1], [0, 0, 1, 1], [], []>} : vector<8x128xbf16>, vector<128x128xbf16>, vector<8x128xf32> -> vector<8x128xf32>
    %c0_12 = arith.constant 0 : index
    %c0_13 = arith.constant 0 : index
    %28 = vector.load %arg5[%c0_12, %c0_13] : memref<1x128xf32, #tpu.memory_space<vmem>>, vector<1x128xf32>
    %29 = vector.broadcast %28 : vector<1x128xf32> to vector<8x128xf32>
    %30 = arith.addf %27, %29 : vector<8x128xf32>
    %31 = arith.truncf %30 : vector<8x128xf32> to vector<8x128xbf16>
    %c0_14 = arith.constant 0 : index
    %c0_15 = arith.constant 0 : index
    %32 = vector.load %arg6[%c0_14, %c0_15] : memref<8x128xbf16, #tpu.memory_space<vmem>>, vector<8x128xbf16>
    tpu.vector_store %arg6[%c0_14, %c0_15], %31 {strides = array<i32>} : memref<8x128xbf16, #tpu.memory_space<vmem>>, vector<8x128xbf16>,
    return
  }
  func.func @transform_0(%arg0: i32) -> (i32, i32) {
    %c0_i32 = arith.constant 0 : i32
    %c0_i32_0 = arith.constant 0 : i32
    return %arg0, %c0_i32 : i32, i32
  }
  func.func @transform_1(%arg0: i32) -> (i32, i32) {
    %c0_i32 = arith.constant 0 : i32
    %c0_i32_0 = arith.constant 0 : i32
    %c0_i32_1 = arith.constant 0 : i32
    return %c0_i32, %c0_i32_0 : i32, i32
  }
  func.func @transform_2(%arg0: i32) -> (i32, i32) {
    %c0_i32 = arith.constant 0 : i32
    %c0_i32_0 = arith.constant 0 : i32
    %c0_i32_1 = arith.constant 0 : i32
    return %c0_i32, %c0_i32_0 : i32, i32
  }
  func.func @transform_3(%arg0: i32) -> (i32, i32) {
    %c0_i32 = arith.constant 0 : i32
    %c0_i32_0 = arith.constant 0 : i32
    %c0_i32_1 = arith.constant 0 : i32
    return %c0_i32, %c0_i32_0 : i32, i32
  }
  func.func @transform_4(%arg0: i32) -> (i32, i32) {
    %c0_i32 = arith.constant 0 : i32
    %c0_i32_0 = arith.constant 0 : i32
    %c0_i32_1 = arith.constant 0 : i32
    return %c0_i32, %c0_i32_0 : i32, i32
  }
  func.func @transform_5(%arg0: i32) -> (i32, i32) {
    %c0_i32 = arith.constant 0 : i32
    %c0_i32_0 = arith.constant 0 : i32
    return %arg0, %c0_i32 : i32, i32
  }
}

</mosaic_0001>

<llo_original>
// kernel: tpu_custom_call.1
$region0: #{tpu_custom_call.1}
  #allocation0 [shape = 'u32[]', space=smem, size = 0x4, offset = 0x4, fixed_abs, tag = 'smem constant byte address 0x4 - core index']
  #allocation1 [shape = 'u32[144,128]{1,0:T(1,128)}', space=vmem, size = 0x12000, scoped, tag = 'internal scratch']
  %s0 = inlined_call_operand.hbm [shape: f32[16,128], index: 0, kind: input, shape index: {}]
  %s1 = inlined_call_operand.vmem [shape: f32[1,128], index: 1, kind: input, shape index: {}]
  %s2 = inlined_call_operand.vmem [shape: f32[1,128], index: 2, kind: input, shape index: {}]
  %s3 = inlined_call_operand.hbm [shape: bf16[128,128], index: 3, kind: input, shape index: {}]
  %s4 = inlined_call_operand.vmem [shape: f32[1,128], index: 4, kind: input, shape index: {}]
  %s5 = inlined_call_operand.hbm [shape: bf16[16,128], index: 5, kind: output, shape index: {}]
  %s6 = sld [smem:[#allocation0]]
  $region61: #{tpu_custom_call.1} parent=0
    _
  %s8 = ssub.s32 1, %s6
  %s9 = scalar_select 0, %s8, %s6
  $region1: #{tpu_custom_call.1} parent=0
    #allocation2 [shape = 'u8[8192]{0}', space=vmem, size = 0x2000, scoped, tag = 'input window, operand 0']
    #allocation3 [shape = 's32[2]{0}', space=sflag, size = 0x8, scoped, tag = 'scoped memory for tpu_custom_call.1']
    #allocation4 [shape = 's32[2]{0}', space=sflag, size = 0x8, scoped, tag = 'scoped memory for tpu_custom_call.1']
    #allocation5 [shape = 'u8[32768]{0}', space=vmem, size = 0x8000, scoped, tag = 'input window, operand 3, single buffered']
    #allocation6 [shape = 's32[1]{0}', space=sflag, size = 0x4, scoped, tag = 'scoped memory for tpu_custom_call.1']
    #allocation7 [shape = 'u8[4096]{0}', space=vmem, size = 0x1000, scoped, tag = 'output window, operand 0']
    %10 = vsyncpa [#allocation3], 0
    %s11 = scalar_lea.sflag [#allocation3], 1
    %12 = vsyncpa %s11, 0
    %13 = vsyncpa [#allocation6], 0
    %14 = vsyncpa [#allocation4], 0
    %s15 = scalar_lea.sflag [#allocation4], 1
    %16 = vsyncpa %s15, 0
    loop: start=0, step=1, limit=4
    $region2: #{tpu_custom_call.1} parent=1 // loop_pre_header
      _
    $region3: #{tpu_custom_call.1} parent=1 // loop_header
      %s18 = sphi 0, %s22
      %p19 = scmp.ge.s32.totalorder %s18, 4
      %s28 = sphi 0, %s30
      %s31 = sphi 0, %s28
      %s32 = sphi 0, %s31
      %s48 = sphi 0, %s32
      %s52 = sphi 0, %s52
      %s54 = sphi 0, %s52
      %s55 = sphi 0, %s54
      %s69 = sphi 0, %s55
      %s73 = sphi 0, %s73
      %s75 = sphi 0, %s73
      %s76 = sphi 0, %s75
      %s90 = sphi 0, %s76
      %s94 = sphi 0, %s94
      %s96 = sphi 0, %s94
      %s97 = sphi 0, %s96
      %s111 = sphi 0, %s97
      %s115 = sphi 0, %s115
      %s117 = sphi 0, %s115
      %s118 = sphi 0, %s117
      %s132 = sphi 0, %s118
      %s138 = sphi 0, %s140
      %s141 = sphi 0, %s138
      %s142 = sphi 0, %s141
      %s158 = sphi 0, %s142
    $region4: #{tpu_custom_call.1} parent=1 // loop_header_branch
      %21 = sbr.rel (%p19) target = $region8
    $region5: #{tpu_custom_call.1} parent=1 // loop_body
      %s23 = ssub.s32 %s18, 1
      %s24 = ssub.s32 %s18, 2
      %s25 = sadd.s32 %s18, 1
      %s26 = ssub.s32 %s18, %s25
      %p27 = scmp.eq.s32.totalorder %s26, 0
      %s29 = sadd.s32 %s28, 1
      %s30 = scalar_select %p27, %s28, %s29
      %p33 = pneg %p27
      %p34 = scmp.eq.s32.totalorder %s18, 1
      %p35 = por %p33, %p34
      %p36 = scmp.ne.s32.totalorder %s28, %s31
      %p37 = scmp.eq.s32.totalorder %s18, 0
      %p38 = por %p36, %p37
      %p39 = scmp.ne.s32.totalorder %s28, %s31
      %p40 = scmp.eq.s32.totalorder %s23, 1
      %p41 = por %p39, %p40
      %p42 = scmp.ne.s32.totalorder %s31, %s32
      %p43 = scmp.eq.s32.totalorder %s23, 0
      %p44 = por %p42, %p43
      %p45 = scmp.ne.s32.totalorder %s31, %s32
      %p46 = scmp.eq.s32.totalorder %s24, 1
      %p47 = por %p45, %p46
      %p49 = scmp.ne.s32.totalorder %s32, %s48
      %p50 = scmp.eq.s32.totalorder %s24, 0
      %p51 = por %p49, %p50
      %s53 = sadd.s32 %s52, 1
      %p56 = scmp.eq.s32.totalorder %s18, 1
      %p57 = scmp.ne.s32.totalorder %s52, %s54
      %p58 = scmp.eq.s32.totalorder %s18, 0
      %p59 = por %p57, %p58
      %p60 = scmp.ne.s32.totalorder %s52, %s54
      %p61 = scmp.eq.s32.totalorder %s23, 1
      %p62 = por %p60, %p61
      %p63 = scmp.ne.s32.totalorder %s54, %s55
      %p64 = scmp.eq.s32.totalorder %s23, 0
      %p65 = por %p63, %p64
      %p66 = scmp.ne.s32.totalorder %s54, %s55
      %p67 = scmp.eq.s32.totalorder %s24, 1
      %p68 = por %p66, %p67
      %p70 = scmp.ne.s32.totalorder %s55, %s69
      %p71 = scmp.eq.s32.totalorder %s24, 0
      %p72 = por %p70, %p71
      %s74 = sadd.s32 %s73, 1
      %p77 = scmp.eq.s32.totalorder %s18, 1
      %p78 = scmp.ne.s32.totalorder %s73, %s75
      %p79 = scmp.eq.s32.totalorder %s18, 0
      %p80 = por %p78, %p79
      %p81 = scmp.ne.s32.totalorder %s73, %s75
      %p82 = scmp.eq.s32.totalorder %s23, 1
      %p83 = por %p81, %p82
      %p84 = scmp.ne.s32.totalorder %s75, %s76
      %p85 = scmp.eq.s32.totalorder %s23, 0
      %p86 = por %p84, %p85
      %p87 = scmp.ne.s32.totalorder %s75, %s76
      %p88 = scmp.eq.s32.totalorder %s24, 1
      %p89 = por %p87, %p88
      %p91 = scmp.ne.s32.totalorder %s76, %s90
      %p92 = scmp.eq.s32.totalorder %s24, 0
      %p93 = por %p91, %p92
      %s95 = sadd.s32 %s94, 1
      %p98 = scmp.eq.s32.totalorder %s18, 1
      %p99 = scmp.ne.s32.totalorder %s94, %s96
      %p100 = scmp.eq.s32.totalorder %s18, 0
      %p101 = por %p99, %p100
      %p102 = scmp.ne.s32.totalorder %s94, %s96
      %p103 = scmp.eq.s32.totalorder %s23, 1
      %p104 = por %p102, %p103
      %p105 = scmp.ne.s32.totalorder %s96, %s97
      %p106 = scmp.eq.s32.totalorder %s23, 0
      %p107 = por %p105, %p106
      %p108 = scmp.ne.s32.totalorder %s96, %s97
      %p109 = scmp.eq.s32.totalorder %s24, 1
      %p110 = por %p108, %p109
      %p112 = scmp.ne.s32.totalorder %s97, %s111
      %p113 = scmp.eq.s32.totalorder %s24, 0
      %p114 = por %p112, %p113
      %s116 = sadd.s32 %s115, 1
      %p119 = scmp.eq.s32.totalorder %s18, 1
      %p120 = scmp.ne.s32.totalorder %s115, %s117
      %p121 = scmp.eq.s32.totalorder %s18, 0
      %p122 = por %p120, %p121
      %p123 = scmp.ne.s32.totalorder %s115, %s117
      %p124 = scmp.eq.s32.totalorder %s23, 1
      %p125 = por %p123, %p124
      %p126 = scmp.ne.s32.totalorder %s117, %s118
      %p127 = scmp.eq.s32.totalorder %s23, 0
      %p128 = por %p126, %p127
      %p129 = scmp.ne.s32.totalorder %s117, %s118
      %p130 = scmp.eq.s32.totalorder %s24, 1
      %p131 = por %p129, %p130
      %p133 = scmp.ne.s32.totalorder %s118, %s132
      %p134 = scmp.eq.s32.totalorder %s24, 0
      %p135 = por %p133, %p134
      %s136 = ssub.s32 %s18, %s25
      %p137 = scmp.eq.s32.totalorder %s136, 0
      %s139 = sadd.s32 %s138, 1
      %s140 = scalar_select %p137, %s138, %s139
      %p143 = pneg %p137
      %p144 = scmp.eq.s32.totalorder %s18, 1
      %p145 = por %p143, %p144
      %p146 = scmp.ne.s32.totalorder %s138, %s141
      %p147 = scmp.eq.s32.totalorder %s18, 0
      %p148 = por %p146, %p147
      %p149 = scmp.ne.s32.totalorder %s138, %s141
      %p150 = scmp.eq.s32.totalorder %s23, 1
      %p151 = por %p149, %p150
      %p152 = scmp.ne.s32.totalorder %s141, %s142
      %p153 = scmp.eq.s32.totalorder %s23, 0
      %p154 = por %p152, %p153
      %p155 = scmp.ne.s32.totalorder %s141, %s142
      %p156 = scmp.eq.s32.totalorder %s24, 1
      %p157 = por %p155, %p156
      %p159 = scmp.ne.s32.totalorder %s142, %s158
      %p160 = scmp.eq.s32.totalorder %s24, 0
      %p161 = por %p159, %p160
      %p162 = scmp.le.s32.totalorder 1, %s18
      %p163 = scmp.lt.s32.totalorder %s18, 3
      %p164 = pnand %p162, %p163
      %p165 = pneg %p164
      // Predicated region
      $region9: #{tpu_custom_call.1} parent=5 // pred_check
        _
      $region10: #{tpu_custom_call.1} parent=5 // pred_check_branch
        %167 = sbr.rel (%p164) target = $region12
      $region11: #{tpu_custom_call.1} parent=5 // pred_region
        %s168 = ssub.s32 %s18, 1
        // Predicated region
        $region13: #{tpu_custom_call.1} parent=11 // pred_check
          %p169 = pneg %p65
        $region14: #{tpu_custom_call.1} parent=11 // pred_check_branch
          %171 = sbr.rel (%p169) target = $region16
        $region15: #{tpu_custom_call.1} parent=11 // pred_region
          _
        $region16: #{tpu_custom_call.1} parent=11 // pred_fallthru
          _
        // Predicated region
        $region17: #{tpu_custom_call.1} parent=11 // pred_check
          %p172 = pneg %p86
        $region18: #{tpu_custom_call.1} parent=11 // pred_check_branch
          %174 = sbr.rel (%p172) target = $region20
        $region19: #{tpu_custom_call.1} parent=11 // pred_region
          _
        $region20: #{tpu_custom_call.1} parent=11 // pred_fallthru
          _
        // Predicated region
        $region21: #{tpu_custom_call.1} parent=11 // pred_check
          %p175 = pneg %p107
        $region22: #{tpu_custom_call.1} parent=11 // pred_check_branch
          %177 = sbr.rel (%p175) target = $region24
        $region23: #{tpu_custom_call.1} parent=11 // pred_region
          %s179 = ssub.s32 1024, 1024
          %180 = vsyncadd [#allocation6], %s179
          %s181 = sshll.u32 [#allocation5], 4
          %s182 = int_to_ptr.vmem [resolvable:$true] %s181
          %187 = dma.hbm_to_vmem [thread:$0]  %s3, 1024, %s182, [#allocation6], 64, 64, 4
        $region24: #{tpu_custom_call.1} parent=11 // pred_fallthru
          _
        // Predicated region
        $region25: #{tpu_custom_call.1} parent=11 // pred_check
          %p188 = pneg %p128
        $region26: #{tpu_custom_call.1} parent=11 // pred_check_branch
          %190 = sbr.rel (%p188) target = $region28
        $region27: #{tpu_custom_call.1} parent=11 // pred_region
          _
        $region28: #{tpu_custom_call.1} parent=11 // pred_fallthru
          _
      $region12: #{tpu_custom_call.1} parent=5 // pred_fallthru
        _
      %p191 = scmp.lt.s32.totalorder %s18, 2
      // Predicated region
      $region29: #{tpu_custom_call.1} parent=5 // pred_check
        %p192 = pneg %p191
      $region30: #{tpu_custom_call.1} parent=5 // pred_check_branch
        %194 = sbr.rel (%p192) target = $region32
      $region31: #{tpu_custom_call.1} parent=5 // pred_region
        // Predicated region
        $region33: #{tpu_custom_call.1} parent=31 // pred_check
          %p195 = pneg %p38
        $region34: #{tpu_custom_call.1} parent=31 // pred_check_branch
          %197 = sbr.rel (%p195) target = $region36
        $region35: #{tpu_custom_call.1} parent=31 // pred_region
          %s198 = sand.u32 %s28, 1
          %s199 = scalar_lea.sflag [#allocation3], %s198
          %s200 = sand.u32 %s28, 1
          %s201 = smul.addr %s200, 8
          %s202 = scalar_lea.vmem [#allocation2], %s201
          %s204 = ssub.s32 128, 128
          %205 = vsyncadd %s199, %s204
          %s206 = smul.addr %s18, 128
          %s207 = scalar_lea.hbm %s0, %s206
          %s209 = sshll.u32 %s202, 4
          %s210 = int_to_ptr.vmem [resolvable:$true] %s209
          %212 = dma.hbm_to_vmem [thread:$0]  %s207, 128, %s210, %s199
        $region36: #{tpu_custom_call.1} parent=31 // pred_fallthru
          _
      $region32: #{tpu_custom_call.1} parent=5 // pred_fallthru
        _
      %p213 = scmp.le.s32.totalorder 1, %s18
      %p214 = scmp.lt.s32.totalorder %s18, 3
      %p215 = pnand %p213, %p214
      %p216 = pneg %p215
      // Predicated region
      $region37: #{tpu_custom_call.1} parent=5 // pred_check
        _
      $region38: #{tpu_custom_call.1} parent=5 // pred_check_branch
        %218 = sbr.rel (%p215) target = $region40
      $region39: #{tpu_custom_call.1} parent=5 // pred_region
        %s219 = ssub.s32 %s18, 1
        %s220 = sand.u32 %s31, 1
        %s221 = scalar_lea.sflag [#allocation3], %s220
        %s222 = sand.u32 %s31, 1
        %s223 = smul.addr %s222, 8
        %s224 = scalar_lea.vmem [#allocation2], %s223
        // Predicated region
        $region41: #{tpu_custom_call.1} parent=39 // pred_check
          %p225 = pneg %p44
        $region42: #{tpu_custom_call.1} parent=39 // pred_check_branch
          %227 = sbr.rel (%p225) target = $region44
        $region43: #{tpu_custom_call.1} parent=39 // pred_region
          %228 = dma.done %s221, 128
        $region44: #{tpu_custom_call.1} parent=39 // pred_fallthru
          _
        // Predicated region
        $region45: #{tpu_custom_call.1} parent=39 // pred_check
          %p229 = pneg %p107
        $region46: #{tpu_custom_call.1} parent=39 // pred_check_branch
          %231 = sbr.rel (%p229) target = $region48
        $region47: #{tpu_custom_call.1} parent=39 // pred_region
          %232 = dma.done [#allocation6], 1024
        $region48: #{tpu_custom_call.1} parent=39 // pred_fallthru
          _
        %s233 = sand.u32 %s31, 1
        %s234 = scalar_lea.sflag [#allocation3], %s233
        %s235 = sand.u32 %s31, 1
        %s236 = smul.addr %s235, 8
        %s237 = scalar_lea.vmem [#allocation2], %s236
        %p238 = pneg %p44
        %p239 = pneg %p41
        %p240 = pneg %p65
        %p241 = pneg %p62
        %p242 = pneg %p86
        %p243 = pneg %p83
        %p244 = pneg %p107
        %p245 = pneg %p104
        %p246 = pneg %p128
        %p247 = pneg %p125
        %p248 = pneg %p154
        %p249 = pneg %p151
        %s250 = sand.u32 %s141, 1
        %s251 = scalar_lea.sflag [#allocation4], %s250
        %s252 = sand.u32 %s141, 1
        %s253 = smul.addr %s252, 4
        %s254 = scalar_lea.vmem [#allocation7], %s253
        %v256 = vld [vmem:[%s224] sm:$0xff]
        %257 = vadd.xlane.f32.xlu0 %v256
        %v258 = vpop.xlane.xlu0 %257
        %v259 = vmul.f32 %v258, 0.03125
        %v260 = vmul.f32 %v256, %v256
        %261 = vadd.xlane.f32.xlu0 %v260
        %v262 = vpop.xlane.xlu0 %261
        %v263 = vmul.f32 %v262, 0.03125
        %v264 = vmul.f32 %v259, %v259
        %v265 = vsub.f32 %v263, %v264
        %v266 = vsub.f32 %v256, %v259
        %v267 = vadd.f32 %v265, 1e-05
        %v268 = vrsqrt.pop %v267
        %v269 = vmul.f32 %v266, %v268
        %v270 = vld [vmem:[%s1] sm:$0x1]
        %v272 = vlaneseq
        %v273 = vshrl.u32 %v272, 7
        %v274 = vsub.s32 0, %v273
        %v275 = vrot.slane %v270, %v274
        %v277 = vmul.f32 %v269, %v275
        %v278 = vld [vmem:[%s2] sm:$0x1]
        %v280 = vlaneseq
        %v281 = vshrl.u32 %v280, 7
        %v282 = vsub.s32 0, %v281
        %v283 = vrot.slane %v278, %v282
        %v285 = vadd.f32 %v277, %v283
        %v286 = vpack.c.bf16 %v285, %v285
        %v287 = vld [vmem:[#allocation5] sm:$0xf]
        %v288 = vld [vmem:[#allocation5 + $0x4] sm:$0xf]
        %v289 = vld [vmem:[#allocation5 + $0x8] sm:$0xf]
        %v290 = vld [vmem:[#allocation5 + $0xc] sm:$0xf]
        %v291 = vld [vmem:[#allocation5 + $0x10] sm:$0xf]
        %v292 = vld [vmem:[#allocation5 + $0x14] sm:$0xf]
        %v293 = vld [vmem:[#allocation5 + $0x18] sm:$0xf]
        %v294 = vld [vmem:[#allocation5 + $0x1c] sm:$0xf]
        %v295 = vld [vmem:[#allocation5 + $0x20] sm:$0xf]
        %v296 = vld [vmem:[#allocation5 + $0x24] sm:$0xf]
        %v297 = vld [vmem:[#allocation5 + $0x28] sm:$0xf]
        %v298 = vld [vmem:[#allocation5 + $0x2c] sm:$0xf]
        %v299 = vld [vmem:[#allocation5 + $0x30] sm:$0xf]
        %v300 = vld [vmem:[#allocation5 + $0x34] sm:$0xf]
        %v301 = vld [vmem:[#allocation5 + $0x38] sm:$0xf]
        %v302 = vld [vmem:[#allocation5 + $0x3c] sm:$0xf]
        %v303 = vld [vmem:[%s4] sm:$0x1]
        %v305 = vlaneseq
        %v306 = vshrl.u32 %v305, 7
        %v307 = vsub.s32 0, %v306
        %v308 = vrot.slane %v303, %v307
        %v326 = vunpack.c.l.b16 %v287
        %v327 = vunpack.c.l.b16 %v288
        %v328 = vunpack.c.l.b16 %v289
        %v329 = vunpack.c.l.b16 %v290
        %v330 = vunpack.c.l.b16 %v291
        %v331 = vunpack.c.l.b16 %v292
        %v332 = vunpack.c.l.b16 %v293
        %v333 = vunpack.c.l.b16 %v294
        %v334 = vunpack.c.l.b16 %v295
        %v335 = vunpack.c.l.b16 %v296
        %v336 = vunpack.c.l.b16 %v297
        %v337 = vunpack.c.l.b16 %v298
        %v338 = vunpack.c.l.b16 %v299
        %v339 = vunpack.c.l.b16 %v300
        %v340 = vunpack.c.l.b16 %v301
        %v341 = vunpack.c.l.b16 %v302
        %v342 = vpack.c.b16 %v327, %v326
        %v343 = vpack.c.b16 %v329, %v328
        %v344 = vpack.c.b16 %v331, %v330
        %v345 = vpack.c.b16 %v333, %v332
        %v346 = vpack.c.b16 %v335, %v334
        %v347 = vpack.c.b16 %v337, %v336
        %v348 = vpack.c.b16 %v339, %v338
        %v349 = vpack.c.b16 %v341, %v340
        %358 = vmatprep.subr.bf16.mxu0 0
        %359 = vmatpush1.bf16.msra.mxu0 %v342
        %360 = vmatprep.subr.bf16.mxu0 0
        %361 = vmatpush1.bf16.msra.mxu0 %v343
        %362 = vmatprep.subr.bf16.mxu0 0
        %363 = vmatpush1.bf16.msra.mxu0 %v344
        %364 = vmatprep.subr.bf16.mxu0 0
        %365 = vmatpush1.bf16.msra.mxu0 %v345
        %366 = vmatprep.subr.bf16.mxu0 0
        %367 = vmatpush1.bf16.msra.mxu0 %v346
        %368 = vmatprep.subr.bf16.mxu0 0
        %369 = vmatpush1.bf16.msra.mxu0 %v347
        %370 = vmatprep.subr.bf16.mxu0 0
        %371 = vmatpush1.bf16.msra.mxu0 %v348
        %372 = vmatprep.subr.bf16.mxu0 0
        %373 = vmatpush1.bf16.msra.mxu0 %v349
        %374 = vmatprep.subr.bf16.mxu0 0
        %375 = vmatpush1.bf16.msra.mxu0 0
        %376 = vmatprep.subr.bf16.mxu0 0
        %377 = vmatpush1.bf16.msra.mxu0 0
        %378 = vmatprep.subr.bf16.mxu0 0
        %379 = vmatpush1.bf16.msra.mxu0 0
        %380 = vmatprep.subr.bf16.mxu0 0
        %381 = vmatpush1.bf16.msra.mxu0 0
        %382 = vmatprep.subr.bf16.mxu0 0
        %383 = vmatpush1.bf16.msra.mxu0 0
        %384 = vmatprep.subr.bf16.mxu0 0
        %385 = vmatpush1.bf16.msra.mxu0 0
        %386 = vmatprep.subr.bf16.mxu0 0
        %387 = vmatpush1.bf16.msra.mxu0 0
        %388 = vmatprep.subr.bf16.mxu0 0
        %389 = vmatpush1.bf16.msra.mxu0 0
        %390 = vmatprep.mubr.bf16.mxu0 0
        %391 = vmatmul.mubr.bf16.gmra.mrb[0].mxu0 %v286
        %v392 = vpop.f32.mrb[0].mxu0
        %v393 = vadd.f32 %v308, %v392
        %v394 = vpop.f32.mrb[0].mxu0
        %v395 = vpop.f32.mrb[0].mxu0
        %v396 = vpop.f32.mrb[0].mxu0
        %397 = vdwg.mxu0
        %v398 = vpack.c.bf16 %v393, %v393
        %399 = vst [vmem:[%s254] sm:$0xf] %v398
        %s400 = sand.u32 %s141, 1
        %s401 = scalar_lea.sflag [#allocation4], %s400
        %s402 = sand.u32 %s141, 1
        %s403 = smul.addr %s402, 4
        %s404 = scalar_lea.vmem [#allocation7], %s403
        // Predicated region
        $region49: #{tpu_custom_call.1} parent=39 // pred_check
          %p405 = pneg %p151
        $region50: #{tpu_custom_call.1} parent=39 // pred_check_branch
          %407 = sbr.rel (%p405) target = $region52
        $region51: #{tpu_custom_call.1} parent=39 // pred_region
          %s409 = ssub.s32 64, 64
          %410 = vsyncadd %s401, %s409
          %s411 = smul.addr %s23, 64
          %s412 = scalar_lea.hbm %s5, %s411
          %s414 = sshll.u32 %s404, 4
          %s415 = int_to_ptr.vmem [resolvable:$true] %s414
          %417 = dma.vmem_to_hbm [thread:$0]  %s415, 64, %s412, %s401
        $region52: #{tpu_custom_call.1} parent=39 // pred_fallthru
          _
      $region40: #{tpu_custom_call.1} parent=5 // pred_fallthru
        _
      %p418 = scmp.le.s32.totalorder 2, %s18
      // Predicated region
      $region53: #{tpu_custom_call.1} parent=5 // pred_check
        %p419 = pneg %p418
      $region54: #{tpu_custom_call.1} parent=5 // pred_check_branch
        %421 = sbr.rel (%p419) target = $region56
      $region55: #{tpu_custom_call.1} parent=5 // pred_region
        %s422 = ssub.s32 %s18, 2
        // Predicated region
        $region57: #{tpu_custom_call.1} parent=55 // pred_check
          %p423 = pneg %p157
        $region58: #{tpu_custom_call.1} parent=55 // pred_check_branch
          %425 = sbr.rel (%p423) target = $region60
        $region59: #{tpu_custom_call.1} parent=55 // pred_region
          %s426 = sand.u32 %s142, 1
          %s427 = scalar_lea.sflag [#allocation4], %s426
          %s428 = sand.u32 %s142, 1
          %s429 = smul.addr %s428, 4
          %s430 = scalar_lea.vmem [#allocation7], %s429
          %431 = dma.done %s427, 64
        $region60: #{tpu_custom_call.1} parent=55 // pred_fallthru
          _
      $region56: #{tpu_custom_call.1} parent=5 // pred_fallthru
        _
    $region6: #{tpu_custom_call.1} parent=1 // loop_footer
      %s22 = sadd.s32 1, %s18
    $region7: #{tpu_custom_call.1} parent=1 // loop_footer_branch
      %17 = sbr.rel target = $region3
    $region8: #{tpu_custom_call.1} parent=1 // loop_exit
      _
    %432 = vsyncpa [#allocation3], 1
    %s433 = scalar_lea.sflag [#allocation3], 1
    %434 = vsyncpa %s433, 1
    %435 = vsyncpa [#allocation6], 1
    %436 = vsyncpa [#allocation4], 1
    %s437 = scalar_lea.sflag [#allocation4], 1
    %438 = vsyncpa %s437, 1

</llo_original>
